<compile_context>
chip_gen: v7x
topology: tpu7x:2x2x1
jax: 0.10.0
libtpu: 0.0.40
codegen_flags: <defaults>
</compile_context>

<pallas_src>
import jax
import jax.numpy as jnp
from jax import lax
from jax.experimental import pallas as pl
from jax.experimental.pallas import tpu as pltpu

IN_FEATURES = 5
HIDDEN = 3
LANES = 128
TILE_M = 512     # 512 * 128 = 65536 batch rows per grid step (~1.5 MB HBM/step)
CHUNK_M = 32     # (32, 128) register-resident compute chunk inside the kernel

# Packed scalar-parameter layout (all 0.5 sigmoid scalings pre-folded):
_A1_OFF = 0                                  # 0.5 * W1, row-major (3,5)  -> [0,15)
_C1_OFF = _A1_OFF + HIDDEN * IN_FEATURES     # 0.5 * b1                   -> [15,18)
_A2_OFF = _C1_OFF + HIDDEN                   # 0.25 * W2                  -> [18,21)
_C2_OFF = _A2_OFF + HIDDEN                   # 0.5*b2 + 0.25*sum(W2)      -> [21]
_NPARAMS = _C2_OFF + 1                       # 22


def _round_up(a, b):
    return (a + b - 1) // b * b


def mlp_kernel(p_ref, x_ref, o_ref):
    """sigmoid(W2 @ sigmoid(W1 @ x + b1) + b2) for one batch tile.

    p_ref: (22,)               f32 SMEM  -- folded scalar params (layout above)
    x_ref: (5, tile_m, 128)    f32 VMEM  -- batch mapped onto (sublane, lane)
    o_ref: (tile_m, 128)       f32 VMEM  -- lane-dense output tile
    """
    tile_m = o_ref.shape[0]

    # Hoist every scalar parameter out of the chunk loop (SMEM reads -> sregs).
    a1 = [[p_ref[_A1_OFF + j * IN_FEATURES + k] for k in range(IN_FEATURES)]
          for j in range(HIDDEN)]
    c1 = [p_ref[_C1_OFF + j] for j in range(HIDDEN)]
    a2 = [p_ref[_A2_OFF + j] for j in range(HIDDEN)]
    c2 = p_ref[_C2_OFF]

    def chunk(c, carry):
        r = pl.multiple_of(c * CHUNK_M, CHUNK_M)
        xs = [x_ref[k, pl.ds(r, CHUNK_M), :] for k in range(IN_FEATURES)]
        s = None
        for j in range(HIDDEN):
            # t_j = 0.5*(W1[j].x + b1[j]) as unrolled scalar-vector VPU MACs.
            t = a1[j][0] * xs[0]
            for k in range(1, IN_FEATURES):
                t = t + a1[j][k] * xs[k]
            t = jnp.tanh(t + c1[j])           # sigmoid via tanh: 1 EUP op
            term = a2[j] * t
            s = term if s is None else s + term
        # out = sigmoid(W2.h + b2); the 0.5 scalings are folded into a2/c2.
        o_ref[pl.ds(r, CHUNK_M), :] = 0.5 * jnp.tanh(s + c2) + 0.5
        return carry

    lax.fori_loop(0, tile_m // CHUNK_M, chunk, 0)


@jax.jit
def mlp_forward(x, w1, b1, w2, b2):
    """sigmoid(Linear(3,1)(sigmoid(Linear(5,3)(x)))).  x: (N,5) -> (N,1)."""
    n = x.shape[0]
    m = pl.cdiv(max(n, 1), LANES)                 # number of 128-wide batch rows
    tile_m = min(TILE_M, _round_up(m, CHUNK_M))   # rows-of-128 per grid step
    m_pad = _round_up(m, tile_m)
    n_pad = m_pad * LANES

    # Single layout pass: (N,5) -> (5, m_pad, 128); padding only to the tile
    # granularity (bounded), not to a fixed huge tile.
    x_t = jnp.transpose(x.astype(jnp.float32))    # (5, N)
    if n_pad != n:
        x_t = jnp.pad(x_t, ((0, 0), (0, n_pad - n)))
    x_t = x_t.reshape(IN_FEATURES, m_pad, LANES)

    # Fold all sigmoid 0.5-scalings into the scalar parameters (host side).
    w1f = w1.astype(jnp.float32).reshape(HIDDEN * IN_FEATURES)
    b1f = b1.astype(jnp.float32).reshape(HIDDEN)
    w2f = w2.astype(jnp.float32).reshape(HIDDEN)
    b2f = b2.astype(jnp.float32).reshape(1)
    params = jnp.concatenate([
        0.5 * w1f,                                          # a1
        0.5 * b1f,                                          # c1
        0.25 * w2f,                                         # a2
        0.5 * b2f + 0.25 * jnp.sum(w2f, keepdims=True),     # c2
    ])                                                      # (22,)

    grid = (m_pad // tile_m,)
    out = pl.pallas_call(
        mlp_kernel,
        out_shape=jax.ShapeDtypeStruct((m_pad, LANES), jnp.float32),
        grid=grid,
        in_specs=[
            pl.BlockSpec(memory_space=pltpu.MemorySpace.SMEM),            # params
            pl.BlockSpec((IN_FEATURES, tile_m, LANES), lambda i: (0, i, 0)),
        ],
        out_specs=pl.BlockSpec((tile_m, LANES), lambda i: (i, 0)),
        compiler_params=pltpu.CompilerParams(
            dimension_semantics=("parallel",),   # batch axis splits across TCs
        ),
    )(params, x_t)

    y = out.reshape(n_pad, 1)
    if n != n_pad:                               # slice only when not aligned
        y = y[:n]
    return y


def init_params(key):
    # torch.nn.Linear default init: U[-1/sqrt(fan_in), 1/sqrt(fan_in)],
    # weights in PyTorch (out_features, in_features) layout.
    k1, k2, k3, k4 = jax.random.split(key, 4)
    bound1 = 1.0 / jnp.sqrt(5.0)
    bound2 = 1.0 / jnp.sqrt(3.0)
    w1 = jax.random.uniform(k1, (HIDDEN, IN_FEATURES), jnp.float32, -bound1, bound1)
    b1 = jax.random.uniform(k2, (HIDDEN,), jnp.float32, -bound1, bound1)
    w2 = jax.random.uniform(k3, (1, HIDDEN), jnp.float32, -bound2, bound2)
    b2 = jax.random.uniform(k4, (1,), jnp.float32, -bound2, bound2)
    return w1, b1, w2, b2


def _reference(x, w1, b1, w2, b2):
    h = jax.nn.sigmoid(x @ w1.T + b1)
    return jax.nn.sigmoid(h @ w2.T + b2)


if __name__ == "__main__":
    key = jax.random.PRNGKey(0)
    kx, kp = jax.random.split(key)
    w1, b1, w2, b2 = init_params(kp)

    # Small batch (matches the homework's mini-batch size of 8).
    x_small = jax.random.normal(kx, (8, IN_FEATURES), jnp.float32)
    out_small = mlp_forward(x_small, w1, b1, w2, b2)
    jax.block_until_ready(out_small)
    ref_small = _reference(x_small, w1, b1, w2, b2)
    assert out_small.shape == (8, 1)
    assert jnp.allclose(out_small, ref_small, atol=1e-5), "mismatch (batch=8)"

    # Non-aligned batch: exercises padding, slicing and the multi-chunk path.
    x_big = jax.random.normal(kx, (4500, IN_FEATURES), jnp.float32)
    out_big = mlp_forward(x_big, w1, b1, w2, b2)
    jax.block_until_ready(out_big)
    ref_big = _reference(x_big, w1, b1, w2, b2)
    assert out_big.shape == (4500, 1)
    assert jnp.allclose(out_big, ref_big, atol=1e-5), "mismatch (batch=4500)"

    print("KERNEL_OK")
</pallas_src>

<mosaic_0001>
module attributes {stable_mosaic.version = 11 : i64} {
  func.func @mlp_kernel(%arg0: i32, %arg1: memref<22xf32, #tpu.memory_space<smem>>, %arg2: memref<5x32x128xf32, #tpu.memory_space<vmem>>, %arg3: memref<32x128xf32, #tpu.memory_space<vmem>>) attributes {dimension_semantics = [#tpu.dimension_semantics<parallel>], iteration_bounds = array<i64: 1>, scalar_prefetch = 0 : i64, scratch_operands = 0 : i64, tpu.core_type = #tpu.core_type<tc>, window_params = [{transform_indices = @transform_0, window_bounds = array<i64: 22>}, {transform_indices = @transform_1, window_bounds = array<i64: 5, 32, 128>}, {transform_indices = @transform_2, window_bounds = array<i64: 32, 128>}]} {
    %c0 = arith.constant 0 : index
    %0 = memref.load %arg1[%c0] : memref<22xf32, #tpu.memory_space<smem>>
    %c1 = arith.constant 1 : index
    %1 = memref.load %arg1[%c1] : memref<22xf32, #tpu.memory_space<smem>>
    %c2 = arith.constant 2 : index
    %2 = memref.load %arg1[%c2] : memref<22xf32, #tpu.memory_space<smem>>
    %c3 = arith.constant 3 : index
    %3 = memref.load %arg1[%c3] : memref<22xf32, #tpu.memory_space<smem>>
    %c4 = arith.constant 4 : index
    %4 = memref.load %arg1[%c4] : memref<22xf32, #tpu.memory_space<smem>>
    %c5 = arith.constant 5 : index
    %5 = memref.load %arg1[%c5] : memref<22xf32, #tpu.memory_space<smem>>
    %c6 = arith.constant 6 : index
    %6 = memref.load %arg1[%c6] : memref<22xf32, #tpu.memory_space<smem>>
    %c7 = arith.constant 7 : index
    %7 = memref.load %arg1[%c7] : memref<22xf32, #tpu.memory_space<smem>>
    %c8 = arith.constant 8 : index
    %8 = memref.load %arg1[%c8] : memref<22xf32, #tpu.memory_space<smem>>
    %c9 = arith.constant 9 : index
    %9 = memref.load %arg1[%c9] : memref<22xf32, #tpu.memory_space<smem>>
    %c10 = arith.constant 10 : index
    %10 = memref.load %arg1[%c10] : memref<22xf32, #tpu.memory_space<smem>>
    %c11 = arith.constant 11 : index
    %11 = memref.load %arg1[%c11] : memref<22xf32, #tpu.memory_space<smem>>
    %c12 = arith.constant 12 : index
    %12 = memref.load %arg1[%c12] : memref<22xf32, #tpu.memory_space<smem>>
    %c13 = arith.constant 13 : index
    %13 = memref.load %arg1[%c13] : memref<22xf32, #tpu.memory_space<smem>>
    %c14 = arith.constant 14 : index
    %14 = memref.load %arg1[%c14] : memref<22xf32, #tpu.memory_space<smem>>
    %c15 = arith.constant 15 : index
    %15 = memref.load %arg1[%c15] : memref<22xf32, #tpu.memory_space<smem>>
    %c16 = arith.constant 16 : index
    %16 = memref.load %arg1[%c16] : memref<22xf32, #tpu.memory_space<smem>>
    %c17 = arith.constant 17 : index
    %17 = memref.load %arg1[%c17] : memref<22xf32, #tpu.memory_space<smem>>
    %c18 = arith.constant 18 : index
    %18 = memref.load %arg1[%c18] : memref<22xf32, #tpu.memory_space<smem>>
    %c19 = arith.constant 19 : index
    %19 = memref.load %arg1[%c19] : memref<22xf32, #tpu.memory_space<smem>>
    %c20 = arith.constant 20 : index
    %20 = memref.load %arg1[%c20] : memref<22xf32, #tpu.memory_space<smem>>
    %c21 = arith.constant 21 : index
    %21 = memref.load %arg1[%c21] : memref<22xf32, #tpu.memory_space<smem>>
    %c0_i32 = arith.constant 0 : i32
    %c32_i32 = arith.constant 32 : i32
    %22 = arith.muli %c0_i32, %c32_i32 : i32
    %23 = tpu.assume_multiple %22, 32 : i32
    %c0_0 = arith.constant 0 : index
    %24 = arith.index_cast %23 : i32 to index
    %c0_1 = arith.constant 0 : index
    %25 = vector.load %arg2[%c0_0, %24, %c0_1] : memref<5x32x128xf32, #tpu.memory_space<vmem>>, vector<1x32x128xf32>
    %26 = vector.shape_cast %25 : vector<1x32x128xf32> to vector<32x128xf32>
    %c1_2 = arith.constant 1 : index
    %27 = arith.index_cast %23 : i32 to index
    %c0_3 = arith.constant 0 : index
    %28 = vector.load %arg2[%c1_2, %27, %c0_3] : memref<5x32x128xf32, #tpu.memory_space<vmem>>, vector<1x32x128xf32>
    %29 = vector.shape_cast %28 : vector<1x32x128xf32> to vector<32x128xf32>
    %c2_4 = arith.constant 2 : index
    %30 = arith.index_cast %23 : i32 to index
    %c0_5 = arith.constant 0 : index
    %31 = vector.load %arg2[%c2_4, %30, %c0_5] : memref<5x32x128xf32, #tpu.memory_space<vmem>>, vector<1x32x128xf32>
    %32 = vector.shape_cast %31 : vector<1x32x128xf32> to vector<32x128xf32>
    %c3_6 = arith.constant 3 : index
    %33 = arith.index_cast %23 : i32 to index
    %c0_7 = arith.constant 0 : index
    %34 = vector.load %arg2[%c3_6, %33, %c0_7] : memref<5x32x128xf32, #tpu.memory_space<vmem>>, vector<1x32x128xf32>
    %35 = vector.shape_cast %34 : vector<1x32x128xf32> to vector<32x128xf32>
    %c4_8 = arith.constant 4 : index
    %36 = arith.index_cast %23 : i32 to index
    %c0_9 = arith.constant 0 : index
    %37 = vector.load %arg2[%c4_8, %36, %c0_9] : memref<5x32x128xf32, #tpu.memory_space<vmem>>, vector<1x32x128xf32>
    %38 = vector.shape_cast %37 : vector<1x32x128xf32> to vector<32x128xf32>
    %39 = vector.broadcast %0 : f32 to vector<32x128xf32>
    %40 = arith.mulf %39, %26 : vector<32x128xf32>
    %41 = vector.broadcast %1 : f32 to vector<32x128xf32>
    %42 = arith.mulf %41, %29 : vector<32x128xf32>
    %43 = arith.addf %40, %42 : vector<32x128xf32>
    %44 = vector.broadcast %2 : f32 to vector<32x128xf32>
    %45 = arith.mulf %44, %32 : vector<32x128xf32>
    %46 = arith.addf %43, %45 : vector<32x128xf32>
    %47 = vector.broadcast %3 : f32 to vector<32x128xf32>
    %48 = arith.mulf %47, %35 : vector<32x128xf32>
    %49 = arith.addf %46, %48 : vector<32x128xf32>
    %50 = vector.broadcast %4 : f32 to vector<32x128xf32>
    %51 = arith.mulf %50, %38 : vector<32x128xf32>
    %52 = arith.addf %49, %51 : vector<32x128xf32>
    %53 = vector.broadcast %15 : f32 to vector<32x128xf32>
    %54 = arith.addf %52, %53 : vector<32x128xf32>
    %55 = math.tanh %54 : vector<32x128xf32>
    %56 = vector.broadcast %18 : f32 to vector<32x128xf32>
    %57 = arith.mulf %56, %55 : vector<32x128xf32>
    %58 = vector.broadcast %5 : f32 to vector<32x128xf32>
    %59 = arith.mulf %58, %26 : vector<32x128xf32>
    %60 = vector.broadcast %6 : f32 to vector<32x128xf32>
    %61 = arith.mulf %60, %29 : vector<32x128xf32>
    %62 = arith.addf %59, %61 : vector<32x128xf32>
    %63 = vector.broadcast %7 : f32 to vector<32x128xf32>
    %64 = arith.mulf %63, %32 : vector<32x128xf32>
    %65 = arith.addf %62, %64 : vector<32x128xf32>
    %66 = vector.broadcast %8 : f32 to vector<32x128xf32>
    %67 = arith.mulf %66, %35 : vector<32x128xf32>
    %68 = arith.addf %65, %67 : vector<32x128xf32>
    %69 = vector.broadcast %9 : f32 to vector<32x128xf32>
    %70 = arith.mulf %69, %38 : vector<32x128xf32>
    %71 = arith.addf %68, %70 : vector<32x128xf32>
    %72 = vector.broadcast %16 : f32 to vector<32x128xf32>
    %73 = arith.addf %71, %72 : vector<32x128xf32>
    %74 = math.tanh %73 : vector<32x128xf32>
    %75 = vector.broadcast %19 : f32 to vector<32x128xf32>
    %76 = arith.mulf %75, %74 : vector<32x128xf32>
    %77 = arith.addf %57, %76 : vector<32x128xf32>
    %78 = vector.broadcast %10 : f32 to vector<32x128xf32>
    %79 = arith.mulf %78, %26 : vector<32x128xf32>
    %80 = vector.broadcast %11 : f32 to vector<32x128xf32>
    %81 = arith.mulf %80, %29 : vector<32x128xf32>
    %82 = arith.addf %79, %81 : vector<32x128xf32>
    %83 = vector.broadcast %12 : f32 to vector<32x128xf32>
    %84 = arith.mulf %83, %32 : vector<32x128xf32>
    %85 = arith.addf %82, %84 : vector<32x128xf32>
    %86 = vector.broadcast %13 : f32 to vector<32x128xf32>
    %87 = arith.mulf %86, %35 : vector<32x128xf32>
    %88 = arith.addf %85, %87 : vector<32x128xf32>
    %89 = vector.broadcast %14 : f32 to vector<32x128xf32>
    %90 = arith.mulf %89, %38 : vector<32x128xf32>
    %91 = arith.addf %88, %90 : vector<32x128xf32>
    %92 = vector.broadcast %17 : f32 to vector<32x128xf32>
    %93 = arith.addf %91, %92 : vector<32x128xf32>
    %94 = math.tanh %93 : vector<32x128xf32>
    %95 = vector.broadcast %20 : f32 to vector<32x128xf32>
    %96 = arith.mulf %95, %94 : vector<32x128xf32>
    %97 = arith.addf %77, %96 : vector<32x128xf32>
    %98 = vector.broadcast %21 : f32 to vector<32x128xf32>
    %99 = arith.addf %97, %98 : vector<32x128xf32>
    %100 = math.tanh %99 : vector<32x128xf32>
    %cst = arith.constant 5.000000e-01 : f32
    %101 = vector.broadcast %cst : f32 to vector<32x128xf32>
    %102 = arith.mulf %101, %100 : vector<32x128xf32>
    %cst_10 = arith.constant 5.000000e-01 : f32
    %103 = vector.broadcast %cst_10 : f32 to vector<32x128xf32>
    %104 = arith.addf %102, %103 : vector<32x128xf32>
    %105 = arith.index_cast %23 : i32 to index
    %c0_11 = arith.constant 0 : index
    %106 = vector.load %arg3[%105, %c0_11] : memref<32x128xf32, #tpu.memory_space<vmem>>, vector<32x128xf32>
    tpu.vector_store %arg3[%105, %c0_11], %104 {strides = array<i32>} : memref<32x128xf32, #tpu.memory_space<vmem>>, vector<32x128xf32>,
    %c1_i32 = arith.constant 1 : i32
    return
  }
  func.func @transform_0(%arg0: i32) -> i32 {
    %c0_i32 = arith.constant 0 : i32
    %c0_i32_0 = arith.constant 0 : i32
    return %c0_i32 : i32
  }
  func.func @transform_1(%arg0: i32) -> (i32, i32, i32) {
    %c0_i32 = arith.constant 0 : i32
    %c0_i32_0 = arith.constant 0 : i32
    %c0_i32_1 = arith.constant 0 : i32
    return %c0_i32, %arg0, %c0_i32_0 : i32, i32, i32
  }
  func.func @transform_2(%arg0: i32) -> (i32, i32) {
    %c0_i32 = arith.constant 0 : i32
    %c0_i32_0 = arith.constant 0 : i32
    return %arg0, %c0_i32 : i32, i32
  }
}

</mosaic_0001>

<llo_original>
// kernel: mlp_forward.1
$region0: #{mlp_forward.1}
  #allocation0 [shape = 'u32[]', space=smem, size = 0x4, offset = 0x4, fixed_abs, tag = 'smem constant byte address 0x4 - core index']
  #allocation1 [shape = 'u32[144,128]{1,0:T(1,128)}', space=vmem, size = 0x12000, scoped, tag = 'internal scratch']
  %s0 = inlined_call_operand.vmem [shape: f32[22], index: 0, kind: input, shape index: {}]
  %s1 = inlined_call_operand.vmem [shape: f32[5,32,128], index: 1, kind: input, shape index: {}]
  %s2 = inlined_call_operand.vmem [shape: f32[32,128], index: 2, kind: output, shape index: {}]
  %s3 = sld [smem:[#allocation0]]
  $region22: #{mlp_forward.1} parent=0
    _
  %s5 = ssub.s32 1, %s3
  %s6 = scalar_select 0, %s5, %s3
  $region1: #{mlp_forward.1} parent=0
    #allocation2 [shape = 'u8[512]{0}', space=smem, size = 0x200, scoped, tag = 'input window, operand 0, single buffered']
    #allocation3 [shape = 's32[1]{0}', space=sflag, size = 0x4, scoped, tag = 'scoped memory for mlp_forward.1']
    %7 = vsyncpa [#allocation3], 0
    // Predicated region
    $region2: #{mlp_forward.1} parent=1 // pred_check
      _
    $region3: #{mlp_forward.1} parent=1 // pred_check_branch
      %9 = sbr.rel (0) target = $region5
    $region4: #{mlp_forward.1} parent=1 // pred_region
      %s11 = ssub.s32 16, 16
      %12 = vsyncadd [#allocation3], %s11
      %s14 = sshll.u32 %s0, 4
      %s15 = int_to_ptr.vmem [resolvable:$true] %s14
      %17 = dma.vmem_to_smem %s15, 16, [#allocation2], [#allocation3]
    $region5: #{mlp_forward.1} parent=1 // pred_fallthru
      _
    // Predicated region
    $region6: #{mlp_forward.1} parent=1 // pred_check
      _
    $region7: #{mlp_forward.1} parent=1 // pred_check_branch
      %19 = sbr.rel (0) target = $region9
    $region8: #{mlp_forward.1} parent=1 // pred_region
      _
    $region9: #{mlp_forward.1} parent=1 // pred_fallthru
      _
    // Predicated region
    $region10: #{mlp_forward.1} parent=1 // pred_check
      _
    $region11: #{mlp_forward.1} parent=1 // pred_check_branch
      %21 = sbr.rel (0) target = $region13
    $region12: #{mlp_forward.1} parent=1 // pred_region
      %22 = dma.done [#allocation3], 16
    $region13: #{mlp_forward.1} parent=1 // pred_fallthru
      _
    %23 = sfence
    %s24 = sld [smem:[#allocation2]]
    %s25 = sld [smem:[#allocation2 + $0x1]]
    %s26 = sld [smem:[#allocation2 + $0x2]]
    %s27 = sld [smem:[#allocation2 + $0x3]]
    %s28 = sld [smem:[#allocation2 + $0x4]]
    %s29 = sld [smem:[#allocation2 + $0x5]]
    %s30 = sld [smem:[#allocation2 + $0x6]]
    %s31 = sld [smem:[#allocation2 + $0x7]]
    %s32 = sld [smem:[#allocation2 + $0x8]]
    %s33 = sld [smem:[#allocation2 + $0x9]]
    %s34 = sld [smem:[#allocation2 + $0xa]]
    %s35 = sld [smem:[#allocation2 + $0xb]]
    %s36 = sld [smem:[#allocation2 + $0xc]]
    %s37 = sld [smem:[#allocation2 + $0xd]]
    %s38 = sld [smem:[#allocation2 + $0xe]]
    %s39 = sld [smem:[#allocation2 + $0xf]]
    %s40 = sld [smem:[#allocation2 + $0x10]]
    %s41 = sld [smem:[#allocation2 + $0x11]]
    %s42 = sld [smem:[#allocation2 + $0x12]]
    %s43 = sld [smem:[#allocation2 + $0x13]]
    %s44 = sld [smem:[#allocation2 + $0x14]]
    %s45 = sld [smem:[#allocation2 + $0x15]]
    %v46 = vld [vmem:[%s1] sm:$0xff]
    %v47 = vld [vmem:[%s1 + $0x8] sm:$0xff]
    %v48 = vld [vmem:[%s1 + $0x10] sm:$0xff]
    %v49 = vld [vmem:[%s1 + $0x18] sm:$0xff]
    %s50 = sadd.s32 0, 32
    %s51 = scalar_lea.vmem %s1, %s50
    %v52 = vld [vmem:[%s51] sm:$0xff]
    %v53 = vld [vmem:[%s51 + $0x8] sm:$0xff]
    %v54 = vld [vmem:[%s51 + $0x10] sm:$0xff]
    %v55 = vld [vmem:[%s51 + $0x18] sm:$0xff]
    %s56 = sadd.s32 0, 64
    %s57 = scalar_lea.vmem %s1, %s56
    %v58 = vld [vmem:[%s57] sm:$0xff]
    %v59 = vld [vmem:[%s57 + $0x8] sm:$0xff]
    %v60 = vld [vmem:[%s57 + $0x10] sm:$0xff]
    %v61 = vld [vmem:[%s57 + $0x18] sm:$0xff]
    %s62 = sadd.s32 0, 96
    %s63 = scalar_lea.vmem %s1, %s62
    %v64 = vld [vmem:[%s63] sm:$0xff]
    %v65 = vld [vmem:[%s63 + $0x8] sm:$0xff]
    %v66 = vld [vmem:[%s63 + $0x10] sm:$0xff]
    %v67 = vld [vmem:[%s63 + $0x18] sm:$0xff]
    %s68 = sadd.s32 0, 128
    %s69 = scalar_lea.vmem %s1, %s68
    %v70 = vld [vmem:[%s69] sm:$0xff]
    %v71 = vld [vmem:[%s69 + $0x8] sm:$0xff]
    %v72 = vld [vmem:[%s69 + $0x10] sm:$0xff]
    %v73 = vld [vmem:[%s69 + $0x18] sm:$0xff]
    %v74 = vstv %s24
    %v75 = vmul.f32 %v74, %v46
    %v76 = vmul.f32 %v74, %v47
    %v77 = vmul.f32 %v74, %v48
    %v78 = vmul.f32 %v74, %v49
    %v79 = vstv %s25
    %v80 = vmul.f32 %v79, %v52
    %v81 = vmul.f32 %v79, %v53
    %v82 = vmul.f32 %v79, %v54
    %v83 = vmul.f32 %v79, %v55
    %v84 = vadd.f32 %v75, %v80
    %v85 = vadd.f32 %v76, %v81
    %v86 = vadd.f32 %v77, %v82
    %v87 = vadd.f32 %v78, %v83
    %v88 = vstv %s26
    %v89 = vmul.f32 %v88, %v58
    %v90 = vmul.f32 %v88, %v59
    %v91 = vmul.f32 %v88, %v60
    %v92 = vmul.f32 %v88, %v61
    %v93 = vadd.f32 %v84, %v89
    %v94 = vadd.f32 %v85, %v90
    %v95 = vadd.f32 %v86, %v91
    %v96 = vadd.f32 %v87, %v92
    %v97 = vstv %s27
    %v98 = vmul.f32 %v97, %v64
    %v99 = vmul.f32 %v97, %v65
    %v100 = vmul.f32 %v97, %v66
    %v101 = vmul.f32 %v97, %v67
    %v102 = vadd.f32 %v93, %v98
    %v103 = vadd.f32 %v94, %v99
    %v104 = vadd.f32 %v95, %v100
    %v105 = vadd.f32 %v96, %v101
    %v106 = vstv %s28
    %v107 = vmul.f32 %v106, %v70
    %v108 = vmul.f32 %v106, %v71
    %v109 = vmul.f32 %v106, %v72
    %v110 = vmul.f32 %v106, %v73
    %v111 = vadd.f32 %v102, %v107
    %v112 = vadd.f32 %v103, %v108
    %v113 = vadd.f32 %v104, %v109
    %v114 = vadd.f32 %v105, %v110
    %v115 = vstv %s39
    %v116 = vadd.f32 %v111, %v115
    %v117 = vadd.f32 %v112, %v115
    %v118 = vadd.f32 %v113, %v115
    %v119 = vadd.f32 %v114, %v115
    %v120 = vtanh.pop %v116
    %v121 = vtanh.pop %v117
    %v122 = vtanh.pop %v118
    %v123 = vtanh.pop %v119
    %v124 = vstv %s42
    %v125 = vmul.f32 %v124, %v120
    %v126 = vmul.f32 %v124, %v121
    %v127 = vmul.f32 %v124, %v122
    %v128 = vmul.f32 %v124, %v123
    %v129 = vstv %s29
    %v130 = vmul.f32 %v129, %v46
    %v131 = vmul.f32 %v129, %v47
    %v132 = vmul.f32 %v129, %v48
    %v133 = vmul.f32 %v129, %v49
    %v134 = vstv %s30
    %v135 = vmul.f32 %v134, %v52
    %v136 = vmul.f32 %v134, %v53
    %v137 = vmul.f32 %v134, %v54
    %v138 = vmul.f32 %v134, %v55
    %v139 = vadd.f32 %v130, %v135
    %v140 = vadd.f32 %v131, %v136
    %v141 = vadd.f32 %v132, %v137
    %v142 = vadd.f32 %v133, %v138
    %v143 = vstv %s31
    %v144 = vmul.f32 %v143, %v58
    %v145 = vmul.f32 %v143, %v59
    %v146 = vmul.f32 %v143, %v60
    %v147 = vmul.f32 %v143, %v61
    %v148 = vadd.f32 %v139, %v144
    %v149 = vadd.f32 %v140, %v145
    %v150 = vadd.f32 %v141, %v146
    %v151 = vadd.f32 %v142, %v147
    %v152 = vstv %s32
    %v153 = vmul.f32 %v152, %v64
    %v154 = vmul.f32 %v152, %v65
    %v155 = vmul.f32 %v152, %v66
    %v156 = vmul.f32 %v152, %v67
    %v157 = vadd.f32 %v148, %v153
    %v158 = vadd.f32 %v149, %v154
    %v159 = vadd.f32 %v150, %v155
    %v160 = vadd.f32 %v151, %v156
    %v161 = vstv %s33
    %v162 = vmul.f32 %v161, %v70
    %v163 = vmul.f32 %v161, %v71
    %v164 = vmul.f32 %v161, %v72
    %v165 = vmul.f32 %v161, %v73
    %v166 = vadd.f32 %v157, %v162
    %v167 = vadd.f32 %v158, %v163
    %v168 = vadd.f32 %v159, %v164
    %v169 = vadd.f32 %v160, %v165
    %v170 = vstv %s40
    %v171 = vadd.f32 %v166, %v170
    %v172 = vadd.f32 %v167, %v170
    %v173 = vadd.f32 %v168, %v170
    %v174 = vadd.f32 %v169, %v170
    %v175 = vtanh.pop %v171
    %v176 = vtanh.pop %v172
    %v177 = vtanh.pop %v173
    %v178 = vtanh.pop %v174
    %v179 = vstv %s43
    %v180 = vmul.f32 %v179, %v175
    %v181 = vmul.f32 %v179, %v176
    %v182 = vmul.f32 %v179, %v177
    %v183 = vmul.f32 %v179, %v178
    %v184 = vadd.f32 %v125, %v180
    %v185 = vadd.f32 %v126, %v181
    %v186 = vadd.f32 %v127, %v182
    %v187 = vadd.f32 %v128, %v183
    %v188 = vstv %s34
    %v189 = vmul.f32 %v188, %v46
    %v190 = vmul.f32 %v188, %v47
    %v191 = vmul.f32 %v188, %v48
    %v192 = vmul.f32 %v188, %v49
    %v193 = vstv %s35
    %v194 = vmul.f32 %v193, %v52
    %v195 = vmul.f32 %v193, %v53
    %v196 = vmul.f32 %v193, %v54
    %v197 = vmul.f32 %v193, %v55
    %v198 = vadd.f32 %v189, %v194
    %v199 = vadd.f32 %v190, %v195
    %v200 = vadd.f32 %v191, %v196
    %v201 = vadd.f32 %v192, %v197
    %v202 = vstv %s36
    %v203 = vmul.f32 %v202, %v58
    %v204 = vmul.f32 %v202, %v59
    %v205 = vmul.f32 %v202, %v60
    %v206 = vmul.f32 %v202, %v61
    %v207 = vadd.f32 %v198, %v203
    %v208 = vadd.f32 %v199, %v204
    %v209 = vadd.f32 %v200, %v205
    %v210 = vadd.f32 %v201, %v206
    %v211 = vstv %s37
    %v212 = vmul.f32 %v211, %v64
    %v213 = vmul.f32 %v211, %v65
    %v214 = vmul.f32 %v211, %v66
    %v215 = vmul.f32 %v211, %v67
    %v216 = vadd.f32 %v207, %v212
    %v217 = vadd.f32 %v208, %v213
    %v218 = vadd.f32 %v209, %v214
    %v219 = vadd.f32 %v210, %v215
    %v220 = vstv %s38
    %v221 = vmul.f32 %v220, %v70
    %v222 = vmul.f32 %v220, %v71
    %v223 = vmul.f32 %v220, %v72
    %v224 = vmul.f32 %v220, %v73
    %v225 = vadd.f32 %v216, %v221
    %v226 = vadd.f32 %v217, %v222
    %v227 = vadd.f32 %v218, %v223
    %v228 = vadd.f32 %v219, %v224
    %v229 = vstv %s41
    %v230 = vadd.f32 %v225, %v229
    %v231 = vadd.f32 %v226, %v229
    %v232 = vadd.f32 %v227, %v229
    %v233 = vadd.f32 %v228, %v229
    %v234 = vtanh.pop %v230
    %v235 = vtanh.pop %v231
    %v236 = vtanh.pop %v232
    %v237 = vtanh.pop %v233
    %v238 = vstv %s44
    %v239 = vmul.f32 %v238, %v234
    %v240 = vmul.f32 %v238, %v235
    %v241 = vmul.f32 %v238, %v236
    %v242 = vmul.f32 %v238, %v237
    %v243 = vadd.f32 %v184, %v239
    %v244 = vadd.f32 %v185, %v240
    %v245 = vadd.f32 %v186, %v241
    %v246 = vadd.f32 %v187, %v242
    %v247 = vstv %s45
    %v248 = vadd.f32 %v243, %v247
    %v249 = vadd.f32 %v244, %v247
    %v250 = vadd.f32 %v245, %v247
    %v251 = vadd.f32 %v246, %v247
    %v252 = vtanh.pop %v248
    %v253 = vtanh.pop %v249
    %v254 = vtanh.pop %v250
    %v255 = vtanh.pop %v251
    %v256 = vmul.f32 %v252, 0.5
    %v257 = vmul.f32 %v253, 0.5
    %v258 = vmul.f32 %v254, 0.5
    %v259 = vmul.f32 %v255, 0.5
    %v260 = vadd.f32 %v256, 0.5
    %v261 = vadd.f32 %v257, 0.5
    %v262 = vadd.f32 %v258, 0.5
    %v263 = vadd.f32 %v259, 0.5
    %264 = vst [vmem:[%s2] sm:$0xff] %v260
    %265 = vst [vmem:[%s2 + $0x8] sm:$0xff] %v261
    %266 = vst [vmem:[%s2 + $0x10] sm:$0xff] %v262
    %267 = vst [vmem:[%s2 + $0x18] sm:$0xff] %v263
    // Predicated region
    $region14: #{mlp_forward.1} parent=1 // pred_check
      _
    $region15: #{mlp_forward.1} parent=1 // pred_check_branch
      %269 = sbr.rel (0) target = $region17
    $region16: #{mlp_forward.1} parent=1 // pred_region
      _
    $region17: #{mlp_forward.1} parent=1 // pred_fallthru
      _
    // Predicated region
    $region18: #{mlp_forward.1} parent=1 // pred_check
      _
    $region19: #{mlp_forward.1} parent=1 // pred_check_branch
      %271 = sbr.rel (0) target = $region21
    $region20: #{mlp_forward.1} parent=1 // pred_region
      _
    $region21: #{mlp_forward.1} parent=1 // pred_fallthru
      _
    %272 = vsyncpa [#allocation3], 1

</llo_original>
